<compile_context>
chip_gen: v7x
topology: tpu7x:2x2x1
jax: 0.10.0
libtpu: 0.0.40
codegen_flags: <defaults>
</compile_context>

<pallas_src>
import functools

import jax
import jax.numpy as jnp
from jax.experimental import pallas as pl
from jax.experimental.pallas import tpu as pltpu


def _soft_embed_kernel(prompt_before, split, stitch_last_axis,
                       prt_ref, uncond_ref, soft_ref, text_ref,
                       out_ref, cond_scratch):
    """Grid = (2, n_batch_tiles).

    axis 0 ('parallel'):  0 -> unconditional half, 1 -> conditional half
    axis 1 ('arbitrary'): tiles of the per-half batch dimension
    """
    h = pl.program_id(0)
    t = pl.program_id(1)
    out_dtype = out_ref.dtype

    @pl.when(h == 0)
    def _():
        # Unconditional half: cast the small (1, s, d) slab (VPU vcvt, hidden
        # under the output DMA) and broadcast-store it over the Bt rows.
        slab = uncond_ref[...].astype(out_dtype)
        out_ref[...] = jnp.broadcast_to(slab, out_ref.shape)

    @pl.when(h == 1)
    def _():
        # Stitch [soft ; text[prt]] (or reversed for 'after') into an aligned
        # VMEM scratch slab exactly once (t == 0; axis 1 is 'arbitrary' so any
        # core running t > 0 has already run t == 0), then issue full-tile
        # broadcast stores.  The misaligned stitch boundary only ever touches
        # the tiny (1, s, d) scratch, never the (Bt, s, d) output tile.
        @pl.when(t == 0)
        def _():
            first, second = ((soft_ref, text_ref) if prompt_before
                             else (text_ref, soft_ref))
            if stitch_last_axis:
                cond_scratch[:, :, :split] = first[...].astype(out_dtype)
                cond_scratch[:, :, split:] = second[...].astype(out_dtype)
            else:
                cond_scratch[:, :split, :] = first[...].astype(out_dtype)
                cond_scratch[:, split:, :] = second[...].astype(out_dtype)

        out_ref[...] = jnp.broadcast_to(cond_scratch[...], out_ref.shape)


def _plan_tiles(batch_size, row_bytes, resident_bytes, forced_bt=None):
    """Pick batch tile Bt, number of tiles, and the scoped VMEM limit, sized
    against the current chip generation's physical VMEM."""
    try:
        cap = pltpu.get_tpu_info().vmem_capacity_bytes
    except Exception:
        cap = 64 << 20  # most conservative (v7x per-TC)
    # Scoped limit for this call: half of physical, capped at 64 MiB
    # (v7x -> 32 MiB, v5e/v6e -> 64 MiB), leaving room for co-resident fusions.
    limit = min(cap // 2, 64 << 20)
    margin = 2 << 20
    # Output tile is double-buffered by the pipeline -> budget = (limit-rest)/2.
    budget = max(row_bytes, (limit - resident_bytes - margin) // 2)
    bt = max(1, min(batch_size, budget // row_bytes))
    if forced_bt is not None:
        bt = max(1, min(int(forced_bt), batch_size))
    n_tiles = -(-batch_size // bt)  # cdiv; last tile may be partial
    # Guarantee the limit covers what will actually be allocated (guards the
    # Bt == 1 fallback for very large rows).
    limit = max(limit, resident_bytes + 2 * bt * row_bytes + margin)
    return bt, n_tiles, int(limit)


def soft_embedding_forward(uncond_embedding, soft_embedding, text_embeddings,
                           prt_idx=0, batch_size=1, prompt_location="before",
                           out_dtype=None, batch_tile=None):
    """Pallas implementation of SoftEmbedding.forward.

    uncond_embedding: (1, W+S, H)
    soft_embedding:   (1, W, H)
    text_embeddings:  (P, S, H)
    out_dtype: optional output dtype (e.g. jnp.bfloat16); defaults to input
               dtype.  Cast happens in-kernel (inputs stay in their dtype).
    Returns (2*batch_size, W+S, H).
    """
    _, total_seq, H = uncond_embedding.shape
    _, W, _ = soft_embedding.shape
    P, S, _ = text_embeddings.shape
    assert W + S == total_seq, "uncond seq length must equal washsize + text seq"

    in_dtype = uncond_embedding.dtype
    out_dtype = jnp.dtype(in_dtype if out_dtype is None else out_dtype)
    in_item = jnp.dtype(in_dtype).itemsize
    out_item = out_dtype.itemsize

    prt_val = int(prt_idx)
    assert 0 <= prt_val < P, "prt_idx out of range of text_embeddings"
    prt = jnp.asarray([prt_val], dtype=jnp.int32)

    prompt_before = (prompt_location == "before")

    # Lane-dense folding: collapse (seq, H) -> (1, seq*H) whenever the stitch
    # boundary stays a multiple of 128 lanes, so the big output stores are
    # always unmasked full-lane vst (matters when H < 128 or H % 128 != 0).
    fold = (W * H) % 128 == 0 and (S * H) % 128 == 0
    if fold:
        unc = uncond_embedding.reshape(1, 1, total_seq * H)
        soft = soft_embedding.reshape(1, 1, W * H)
        text = text_embeddings.reshape(P, 1, S * H)
        seq_b, hid_b = 1, total_seq * H
        soft_seq_b, soft_hid_b = 1, W * H
        txt_seq_b, txt_hid_b = 1, S * H
        split = (W * H) if prompt_before else (S * H)
    else:
        unc, soft, text = uncond_embedding, soft_embedding, text_embeddings
        seq_b, hid_b = total_seq, H
        soft_seq_b, soft_hid_b = W, H
        txt_seq_b, txt_hid_b = S, H
        split = W if prompt_before else S

    # VMEM accounting: inputs are double-buffered (constant-index, fetched
    # once) + one cond scratch slab + double-buffered output tile.
    row_bytes = seq_b * hid_b * out_item
    resident_bytes = (2 * (total_seq + W + S) * H * in_item
                      + seq_b * hid_b * out_item)
    Bt, n_tiles, vmem_limit = _plan_tiles(batch_size, row_bytes,
                                          resident_bytes, forced_bt=batch_tile)

    kernel = functools.partial(_soft_embed_kernel, prompt_before, split, fold)

    out_bytes = 2 * batch_size * total_seq * H * out_item
    in_bytes = (total_seq + W + S) * H * in_item
    cost = pl.CostEstimate(flops=0, transcendentals=0,
                           bytes_accessed=out_bytes + in_bytes)

    grid_spec = pltpu.PrefetchScalarGridSpec(
        num_scalar_prefetch=1,
        grid=(2, n_tiles),
        in_specs=[
            # uncond embedding: constant block, fetched once, stays resident
            pl.BlockSpec((1, seq_b, hid_b), lambda h, t, p: (0, 0, 0)),
            # soft prompt: constant block
            pl.BlockSpec((1, soft_seq_b, soft_hid_b), lambda h, t, p: (0, 0, 0)),
            # text embeddings: gather row prt_idx via scalar-prefetch index_map
            pl.BlockSpec((1, txt_seq_b, txt_hid_b), lambda h, t, p: (p[0], 0, 0)),
        ],
        out_specs=pl.BlockSpec((1, Bt, seq_b, hid_b),
                               lambda h, t, p: (h, t, 0, 0)),
        scratch_shapes=[pltpu.VMEM((1, seq_b, hid_b), out_dtype)],
    )

    out4 = pl.pallas_call(
        kernel,
        out_shape=jax.ShapeDtypeStruct((2, batch_size, seq_b, hid_b), out_dtype),
        grid_spec=grid_spec,
        compiler_params=pltpu.CompilerParams(
            dimension_semantics=("parallel", "arbitrary"),
            vmem_limit_bytes=vmem_limit),
        cost_estimate=cost,
    )(prt, unc, soft, text)

    # Contiguous (free) reshape back to the module's (2*B, W+S, H) layout.
    return out4.reshape(2 * batch_size, total_seq, H)


def reference_forward(uncond_embedding, soft_embedding, text_embeddings,
                      prt_idx, batch_size, prompt_location="before"):
    text = text_embeddings[prt_idx:prt_idx + 1]
    if prompt_location == "before":
        cond = jnp.concatenate([soft_embedding, text], axis=1)
    else:
        cond = jnp.concatenate([text, soft_embedding], axis=1)
    cond = jnp.broadcast_to(cond, (batch_size,) + cond.shape[1:])
    unc = jnp.broadcast_to(uncond_embedding,
                           (batch_size,) + uncond_embedding.shape[1:])
    return jnp.concatenate([unc, cond], axis=0)


if __name__ == "__main__":
    # Small, deterministic shapes consistent with the module's forward.
    batch_size = 2
    washsize = 4        # W: length of the soft prompt
    text_seq = 8        # S: length of the (pre-sliced) text embeddings
    hidden = 32         # H
    n_prompts = 3       # P
    total_seq = washsize + text_seq
    prt_idx = 1

    key = jax.random.PRNGKey(0)
    k_unc, k_txt, k_soft = jax.random.split(key, 3)

    uncond_embedding = jax.random.normal(
        k_unc, (1, total_seq, hidden), dtype=jnp.float32)
    text_embeddings = jax.random.normal(
        k_txt, (n_prompts, text_seq, hidden), dtype=jnp.float32)
    # init='uniform', init_range=1  ->  soft prompt ~ U(-1, 1), shape (1, W, H)
    soft_embedding = jax.random.uniform(
        k_soft, (1, washsize, hidden), dtype=jnp.float32,
        minval=-1.0, maxval=1.0)

    ok = True

    # 1) Default output dtype (f32), both prompt locations.
    #    (W*H = 128 -> exercises the lane-dense folded path.)
    for loc in ("before", "after"):
        out = soft_embedding_forward(uncond_embedding, soft_embedding,
                                     text_embeddings, prt_idx, batch_size,
                                     prompt_location=loc)
        out = jax.block_until_ready(out)
        ref = reference_forward(uncond_embedding, soft_embedding,
                                text_embeddings, prt_idx, batch_size,
                                prompt_location=loc)
        assert out.shape == (2 * batch_size, total_seq, hidden)
        ok = ok and bool(jnp.allclose(out, ref))

    # 2) bf16 output (the HBM-write-bound fast path): inputs stay f32, cast
    #    happens in-kernel.  Compared against the cast reference.
    out_bf16 = soft_embedding_forward(uncond_embedding, soft_embedding,
                                      text_embeddings, prt_idx, batch_size,
                                      prompt_location="before",
                                      out_dtype=jnp.bfloat16)
    out_bf16 = jax.block_until_ready(out_bf16)
    ref_bf16 = reference_forward(uncond_embedding, soft_embedding,
                                 text_embeddings, prt_idx, batch_size,
                                 prompt_location="before").astype(jnp.bfloat16)
    ok = ok and (out_bf16.dtype == jnp.bfloat16)
    ok = ok and bool(jnp.allclose(out_bf16.astype(jnp.float32),
                                  ref_bf16.astype(jnp.float32)))

    # 3) Un-folded path (stitch boundary not lane-aligned: W=3 -> W*H=96) plus
    #    non-divisor batch tiling (batch=3 with forced Bt=2 -> partial tile).
    soft3 = soft_embedding[:, :3, :]
    unc3 = uncond_embedding[:, :3 + text_seq, :]
    out3 = soft_embedding_forward(unc3, soft3, text_embeddings, prt_idx, 3,
                                  prompt_location="before", batch_tile=2)
    out3 = jax.block_until_ready(out3)
    ref3 = reference_forward(unc3, soft3, text_embeddings, prt_idx, 3,
                             prompt_location="before")
    assert out3.shape == (6, 3 + text_seq, hidden)
    ok = ok and bool(jnp.allclose(out3, ref3))

    assert ok, "Pallas output mismatch vs reference"
    print("KERNEL_OK")
</pallas_src>

<mosaic_0001>
module attributes {stable_mosaic.version = 11 : i64} {
  func.func @_soft_embed_kernel(%arg0: i32, %arg1: i32, %arg2: memref<1xi32, #tpu.memory_space<smem>>, %arg3: memref<1x1x384xf32, #tpu.memory_space<vmem>>, %arg4: memref<1x1x128xf32, #tpu.memory_space<vmem>>, %arg5: memref<1x1x256xf32, #tpu.memory_space<vmem>>, %arg6: memref<1x2x1x384xf32, #tpu.memory_space<vmem>>, %arg7: memref<1x1x384xf32, #tpu.memory_space<vmem>>) attributes {dimension_semantics = [#tpu.dimension_semantics<parallel>, #tpu.dimension_semantics<arbitrary>], iteration_bounds = array<i64: 2, 1>, scalar_prefetch = 1 : i64, scratch_operands = 1 : i64, tpu.core_type = #tpu.core_type<tc>, window_params = [{pipeline_mode = #tpu.pipeline_mode<synchronous>, transform_indices = @transform_0, window_bounds = array<i64: 1, 1, 384>}, {pipeline_mode = #tpu.pipeline_mode<synchronous>, transform_indices = @transform_1, window_bounds = array<i64: 1, 1, 128>}, {transform_indices = @transform_2, window_bounds = array<i64: 1, 1, 256>}, {transform_indices = @transform_3, window_bounds = array<i64: 1, 2, 1, 384>}]} {
    %c0_i32 = arith.constant 0 : i32
    %0 = arith.cmpi eq, %arg0, %c0_i32 : i32
    %1 = arith.extui %0 : i1 to i32
    %c0_i32_0 = arith.constant 0 : i32
    %2 = arith.cmpi ne, %1, %c0_i32_0 : i32
    scf.if %2 {
      %c0 = arith.constant 0 : index
      %c0_2 = arith.constant 0 : index
      %c0_3 = arith.constant 0 : index
      %6 = vector.load %arg3[%c0, %c0_2, %c0_3] : memref<1x1x384xf32, #tpu.memory_space<vmem>>, vector<1x1x384xf32>
      %7 = vector.shape_cast %6 : vector<1x1x384xf32> to vector<1x1x1x384xf32>
      %8 = vector.broadcast %7 : vector<1x1x1x384xf32> to vector<1x2x1x384xf32>
      %c0_4 = arith.constant 0 : index
      %c0_5 = arith.constant 0 : index
      %c0_6 = arith.constant 0 : index
      %c0_7 = arith.constant 0 : index
      %9 = vector.load %arg6[%c0_4, %c0_5, %c0_6, %c0_7] : memref<1x2x1x384xf32, #tpu.memory_space<vmem>>, vector<1x2x1x384xf32>
      tpu.vector_store %arg6[%c0_4, %c0_5, %c0_6, %c0_7], %8 {strides = array<i32>} : memref<1x2x1x384xf32, #tpu.memory_space<vmem>>, vector<1x2x1x384xf32>,
    } else {
    }
    %c1_i32 = arith.constant 1 : i32
    %3 = arith.cmpi eq, %arg0, %c1_i32 : i32
    %4 = arith.extui %3 : i1 to i32
    %c0_i32_1 = arith.constant 0 : i32
    %5 = arith.cmpi ne, %4, %c0_i32_1 : i32
    scf.if %5 {
      %c0_i32_2 = arith.constant 0 : i32
      %6 = arith.cmpi eq, %arg1, %c0_i32_2 : i32
      %7 = arith.extui %6 : i1 to i32
      %c0_i32_3 = arith.constant 0 : i32
      %8 = arith.cmpi ne, %7, %c0_i32_3 : i32
      scf.if %8 {
        %c0_10 = arith.constant 0 : index
        %c0_11 = arith.constant 0 : index
        %c0_12 = arith.constant 0 : index
        %13 = vector.load %arg4[%c0_10, %c0_11, %c0_12] : memref<1x1x128xf32, #tpu.memory_space<vmem>>, vector<1x1x128xf32>
        %c0_13 = arith.constant 0 : index
        %c0_14 = arith.constant 0 : index
        %c0_15 = arith.constant 0 : index
        %14 = vector.load %arg7[%c0_13, %c0_14, %c0_15] : memref<1x1x384xf32, #tpu.memory_space<vmem>>, vector<1x1x128xf32>
        tpu.vector_store %arg7[%c0_13, %c0_14, %c0_15], %13 {strides = array<i32>} : memref<1x1x384xf32, #tpu.memory_space<vmem>>, vector<1x1x128xf32>,
        %c0_16 = arith.constant 0 : index
        %c0_17 = arith.constant 0 : index
        %c0_18 = arith.constant 0 : index
        %15 = vector.load %arg5[%c0_16, %c0_17, %c0_18] : memref<1x1x256xf32, #tpu.memory_space<vmem>>, vector<1x1x256xf32>
        %c0_19 = arith.constant 0 : index
        %c0_20 = arith.constant 0 : index
        %c128 = arith.constant 128 : index
        %16 = vector.load %arg7[%c0_19, %c0_20, %c128] : memref<1x1x384xf32, #tpu.memory_space<vmem>>, vector<1x1x256xf32>
        tpu.vector_store %arg7[%c0_19, %c0_20, %c128], %15 {strides = array<i32>} : memref<1x1x384xf32, #tpu.memory_space<vmem>>, vector<1x1x256xf32>,
      } else {
      }
      %c0 = arith.constant 0 : index
      %c0_4 = arith.constant 0 : index
      %c0_5 = arith.constant 0 : index
      %9 = vector.load %arg7[%c0, %c0_4, %c0_5] : memref<1x1x384xf32, #tpu.memory_space<vmem>>, vector<1x1x384xf32>
      %10 = vector.shape_cast %9 : vector<1x1x384xf32> to vector<1x1x1x384xf32>
      %11 = vector.broadcast %10 : vector<1x1x1x384xf32> to vector<1x2x1x384xf32>
      %c0_6 = arith.constant 0 : index
      %c0_7 = arith.constant 0 : index
      %c0_8 = arith.constant 0 : index
      %c0_9 = arith.constant 0 : index
      %12 = vector.load %arg6[%c0_6, %c0_7, %c0_8, %c0_9] : memref<1x2x1x384xf32, #tpu.memory_space<vmem>>, vector<1x2x1x384xf32>
      tpu.vector_store %arg6[%c0_6, %c0_7, %c0_8, %c0_9], %11 {strides = array<i32>} : memref<1x2x1x384xf32, #tpu.memory_space<vmem>>, vector<1x2x1x384xf32>,
    } else {
    }
    return
  }
  func.func @transform_0(%arg0: i32, %arg1: i32, %arg2: memref<1xi32, #tpu.memory_space<smem>>) -> (i32, i32, i32) {
    %c0_i32 = arith.constant 0 : i32
    %c0_i32_0 = arith.constant 0 : i32
    %c0_i32_1 = arith.constant 0 : i32
    %c0_i32_2 = arith.constant 0 : i32
    return %c0_i32, %c0_i32_0, %c0_i32_1 : i32, i32, i32
  }
  func.func @transform_1(%arg0: i32, %arg1: i32, %arg2: memref<1xi32, #tpu.memory_space<smem>>) -> (i32, i32, i32) {
    %c0_i32 = arith.constant 0 : i32
    %c0_i32_0 = arith.constant 0 : i32
    %c0_i32_1 = arith.constant 0 : i32
    %c0_i32_2 = arith.constant 0 : i32
    return %c0_i32, %c0_i32_0, %c0_i32_1 : i32, i32, i32
  }
  func.func @transform_2(%arg0: i32, %arg1: i32, %arg2: memref<1xi32, #tpu.memory_space<smem>>) -> (i32, i32, i32) {
    %c0 = arith.constant 0 : index
    %0 = memref.load %arg2[%c0] : memref<1xi32, #tpu.memory_space<smem>>
    %c0_i32 = arith.constant 0 : i32
    %c0_i32_0 = arith.constant 0 : i32
    %c0_i32_1 = arith.constant 0 : i32
    return %0, %c0_i32, %c0_i32_0 : i32, i32, i32
  }
  func.func @transform_3(%arg0: i32, %arg1: i32, %arg2: memref<1xi32, #tpu.memory_space<smem>>) -> (i32, i32, i32, i32) {
    %c0_i32 = arith.constant 0 : i32
    %c0_i32_0 = arith.constant 0 : i32
    %c0_i32_1 = arith.constant 0 : i32
    return %arg0, %arg1, %c0_i32, %c0_i32_0 : i32, i32, i32, i32
  }
}

</mosaic_0001>

<llo_original>
// kernel: tpu_custom_call.1
$region0: #{tpu_custom_call.1}
  #allocation0 [shape = 'u32[]', space=smem, size = 0x4, offset = 0x4, fixed_abs, tag = 'smem constant byte address 0x4 - core index']
  #allocation1 [shape = 'u32[144,128]{1,0:T(1,128)}', space=vmem, size = 0x12000, scoped, tag = 'internal scratch']
  #allocation2 [shape = 'f32[1,1,384]{2,1,0:T(1,128)}', space=vmem, size = 0x600, scoped, tag = 'scratch operand']
  #allocation3 [shape = 's32[1]{0}', space=sflag, size = 0x4, scoped, tag = 'scoped memory for tpu_custom_call.1']
  #allocation4 [shape = 's32[1]{0:T(128)S(6)}', space=smem, size = 0x200, scoped, tag = 'prefetched SMEM operand 0']
  %s0 = inlined_call_operand.<no memory space> [shape: s32[1], index: 0, kind: input, shape index: {}]
  %s1 = inlined_call_operand.vmem [shape: f32[1,1,384], index: 1, kind: input, shape index: {}]
  %s2 = inlined_call_operand.vmem [shape: f32[1,1,128], index: 2, kind: input, shape index: {}]
  %s3 = inlined_call_operand.vmem [shape: f32[3,1,256], index: 3, kind: input, shape index: {}]
  %s4 = inlined_call_operand.hbm [shape: f32[2,2,1,384], index: 4, kind: output, shape index: {}]
  %s5 = sld [smem:[#allocation0]]
  $region57: #{tpu_custom_call.1} parent=0
    _
  %s7 = ssub.s32 1, %s5
  %s8 = scalar_select 0, %s7, %s5
  %9 = sst [smem:[#allocation4]] %s0
  $region1: #{tpu_custom_call.1} parent=0
    #allocation5 [shape = 'u8[6144]{0}', space=vmem, size = 0x1800, scoped, tag = 'output window, operand 0']
    #allocation6 [shape = 's32[2]{0}', space=sflag, size = 0x8, scoped, tag = 'scoped memory for tpu_custom_call.1']
    %10 = vsyncpa [#allocation6], 0
    %s11 = scalar_lea.sflag [#allocation6], 1
    %12 = vsyncpa %s11, 0
    loop: start=0, step=1, limit=4
    $region2: #{tpu_custom_call.1} parent=1 // loop_pre_header
      _
    $region3: #{tpu_custom_call.1} parent=1 // loop_header
      %s14 = sphi 0, %s18
      %p15 = scmp.ge.s32.totalorder %s14, 4
      %s21 = sphi 0, %s33
      %s22 = sphi 0, %s29
      %s23 = sphi 0, %s21
      %s24 = sphi 0, %s22
      %s25 = sphi 0, %s23
      %s26 = sphi 0, %s24
      %s34 = sphi 0, %s34
      %s36 = sphi 0, %s34
      %s37 = sphi 0, %s36
      %s51 = sphi 0, %s37
      %s55 = sphi 0, %s55
      %s57 = sphi 0, %s55
      %s58 = sphi 0, %s57
      %s72 = sphi 0, %s58
      %s80 = sphi 0, %s82
      %s83 = sphi 0, %s80
      %s84 = sphi 0, %s83
      %s100 = sphi 0, %s84
      %s108 = sphi 0, %s110
      %s111 = sphi 0, %s108
      %s112 = sphi 0, %s111
      %s128 = sphi 0, %s112
    $region4: #{tpu_custom_call.1} parent=1 // loop_header_branch
      %17 = sbr.rel (%p15) target = $region8
    $region5: #{tpu_custom_call.1} parent=1 // loop_body
      %s19 = ssub.s32 %s14, 1
      %s20 = ssub.s32 %s14, 2
      %s27 = sadd.s32 1, %s22
      %p28 = scmp.ge.s32.totalorder %s27, 1
      %s29 = scalar_select %p28, 0, %s27
      %s30 = sadd.s32 1, %s21
      %s31 = scalar_select %p28, %s30, %s21
      %p32 = scmp.ge.s32.totalorder %s31, 2
      %s33 = scalar_select %p32, 0, %s31
      %s35 = sadd.s32 %s34, 1
      %p38 = scmp.eq.s32.totalorder %s14, 1
      %p39 = scmp.ne.s32.totalorder %s34, %s36
      %p40 = scmp.eq.s32.totalorder %s14, 0
      %p41 = por %p39, %p40
      %p42 = scmp.ne.s32.totalorder %s34, %s36
      %p43 = scmp.eq.s32.totalorder %s19, 1
      %p44 = por %p42, %p43
      %p45 = scmp.ne.s32.totalorder %s36, %s37
      %p46 = scmp.eq.s32.totalorder %s19, 0
      %p47 = por %p45, %p46
      %p48 = scmp.ne.s32.totalorder %s36, %s37
      %p49 = scmp.eq.s32.totalorder %s20, 1
      %p50 = por %p48, %p49
      %p52 = scmp.ne.s32.totalorder %s37, %s51
      %p53 = scmp.eq.s32.totalorder %s20, 0
      %p54 = por %p52, %p53
      %s56 = sadd.s32 %s55, 1
      %p59 = scmp.eq.s32.totalorder %s14, 1
      %p60 = scmp.ne.s32.totalorder %s55, %s57
      %p61 = scmp.eq.s32.totalorder %s14, 0
      %p62 = por %p60, %p61
      %p63 = scmp.ne.s32.totalorder %s55, %s57
      %p64 = scmp.eq.s32.totalorder %s19, 1
      %p65 = por %p63, %p64
      %p66 = scmp.ne.s32.totalorder %s57, %s58
      %p67 = scmp.eq.s32.totalorder %s19, 0
      %p68 = por %p66, %p67
      %p69 = scmp.ne.s32.totalorder %s57, %s58
      %p70 = scmp.eq.s32.totalorder %s20, 1
      %p71 = por %p69, %p70
      %p73 = scmp.ne.s32.totalorder %s58, %s72
      %p74 = scmp.eq.s32.totalorder %s20, 0
      %p75 = por %p73, %p74
      %s76 = sld [smem:[#allocation4]]
      %s77 = sld [smem:[#allocation4]]
      %s78 = ssub.s32 %s76, %s77
      %p79 = scmp.eq.s32.totalorder %s78, 0
      %s81 = sadd.s32 %s80, 1
      %s82 = scalar_select %p79, %s80, %s81
      %p85 = pneg %p79
      %p86 = scmp.eq.s32.totalorder %s14, 1
      %p87 = por %p85, %p86
      %p88 = scmp.ne.s32.totalorder %s80, %s83
      %p89 = scmp.eq.s32.totalorder %s14, 0
      %p90 = por %p88, %p89
      %p91 = scmp.ne.s32.totalorder %s80, %s83
      %p92 = scmp.eq.s32.totalorder %s19, 1
      %p93 = por %p91, %p92
      %p94 = scmp.ne.s32.totalorder %s83, %s84
      %p95 = scmp.eq.s32.totalorder %s19, 0
      %p96 = por %p94, %p95
      %p97 = scmp.ne.s32.totalorder %s83, %s84
      %p98 = scmp.eq.s32.totalorder %s20, 1
      %p99 = por %p97, %p98
      %p101 = scmp.ne.s32.totalorder %s84, %s100
      %p102 = scmp.eq.s32.totalorder %s20, 0
      %p103 = por %p101, %p102
      %s104 = ssub.s32 %s21, %s33
      %s105 = ssub.s32 %s22, %s29
      %s106 = sor.u32 %s104, %s105
      %p107 = scmp.eq.s32.totalorder %s106, 0
      %s109 = sadd.s32 %s108, 1
      %s110 = scalar_select %p107, %s108, %s109
      %p113 = pneg %p107
      %p114 = scmp.eq.s32.totalorder %s14, 1
      %p115 = por %p113, %p114
      %p116 = scmp.ne.s32.totalorder %s108, %s111
      %p117 = scmp.eq.s32.totalorder %s14, 0
      %p118 = por %p116, %p117
      %p119 = scmp.ne.s32.totalorder %s108, %s111
      %p120 = scmp.eq.s32.totalorder %s19, 1
      %p121 = por %p119, %p120
      %p122 = scmp.ne.s32.totalorder %s111, %s112
      %p123 = scmp.eq.s32.totalorder %s19, 0
      %p124 = por %p122, %p123
      %p125 = scmp.ne.s32.totalorder %s111, %s112
      %p126 = scmp.eq.s32.totalorder %s20, 1
      %p127 = por %p125, %p126
      %p129 = scmp.ne.s32.totalorder %s112, %s128
      %p130 = scmp.eq.s32.totalorder %s20, 0
      %p131 = por %p129, %p130
      %p132 = scmp.le.s32.totalorder 1, %s14
      %p133 = scmp.lt.s32.totalorder %s14, 3
      %p134 = pnand %p132, %p133
      %p135 = pneg %p134
      // Predicated region
      $region9: #{tpu_custom_call.1} parent=5 // pred_check
        _
      $region10: #{tpu_custom_call.1} parent=5 // pred_check_branch
        %137 = sbr.rel (%p134) target = $region12
      $region11: #{tpu_custom_call.1} parent=5 // pred_region
        %s138 = ssub.s32 %s14, 1
        // Predicated region
        $region13: #{tpu_custom_call.1} parent=11 // pred_check
          %p139 = pneg %p47
        $region14: #{tpu_custom_call.1} parent=11 // pred_check_branch
          %141 = sbr.rel (%p139) target = $region16
        $region15: #{tpu_custom_call.1} parent=11 // pred_region
          _
        $region16: #{tpu_custom_call.1} parent=11 // pred_fallthru
          _
        // Predicated region
        $region17: #{tpu_custom_call.1} parent=11 // pred_check
          %p142 = pneg %p68
        $region18: #{tpu_custom_call.1} parent=11 // pred_check_branch
          %144 = sbr.rel (%p142) target = $region20
        $region19: #{tpu_custom_call.1} parent=11 // pred_region
          _
        $region20: #{tpu_custom_call.1} parent=11 // pred_fallthru
          _
        // Predicated region
        $region21: #{tpu_custom_call.1} parent=11 // pred_check
          %p145 = pneg %p96
        $region22: #{tpu_custom_call.1} parent=11 // pred_check_branch
          %147 = sbr.rel (%p145) target = $region24
        $region23: #{tpu_custom_call.1} parent=11 // pred_region
          %s148 = sld [smem:[#allocation4]]
          %p149 = scmp.lt.s32.totalorder %s148, 2
          %s150 = scalar_select %p149, %s148, 2
          %s151 = smul.addr %s150, 2
          %s152 = scalar_lea.vmem %s3, %s151
          %s153 = sld [smem:[#allocation4]]
        $region24: #{tpu_custom_call.1} parent=11 // pred_fallthru
          _
      $region12: #{tpu_custom_call.1} parent=5 // pred_fallthru
        _
      %p154 = scmp.lt.s32.totalorder %s14, 2
      // Predicated region
      $region25: #{tpu_custom_call.1} parent=5 // pred_check
        %p155 = pneg %p154
      $region26: #{tpu_custom_call.1} parent=5 // pred_check_branch
        %157 = sbr.rel (%p155) target = $region28
      $region27: #{tpu_custom_call.1} parent=5 // pred_region
        _
      $region28: #{tpu_custom_call.1} parent=5 // pred_fallthru
        _
      %p158 = scmp.le.s32.totalorder 1, %s14
      %p159 = scmp.lt.s32.totalorder %s14, 3
      %p160 = pnand %p158, %p159
      %p161 = pneg %p160
      // Predicated region
      $region29: #{tpu_custom_call.1} parent=5 // pred_check
        _
      $region30: #{tpu_custom_call.1} parent=5 // pred_check_branch
        %163 = sbr.rel (%p160) target = $region32
      $region31: #{tpu_custom_call.1} parent=5 // pred_region
        %s164 = ssub.s32 %s14, 1
        %p165 = pneg %p47
        %p166 = pneg %p44
        %p167 = pneg %p68
        %p168 = pneg %p65
        %s169 = sld [smem:[#allocation4]]
        %p170 = scmp.lt.s32.totalorder %s169, 2
        %s171 = scalar_select %p170, %s169, 2
        %s172 = smul.addr %s171, 2
        %s173 = scalar_lea.vmem %s3, %s172
        %p174 = pneg %p96
        %p175 = pneg %p93
        %p176 = pneg %p124
        %p177 = pneg %p121
        %s178 = sand.u32 %s111, 1
        %s179 = scalar_lea.sflag [#allocation6], %s178
        %s180 = sand.u32 %s111, 1
        %s181 = smul.addr %s180, 6
        %s182 = scalar_lea.vmem [#allocation5], %s181
        %s183 = sld [smem:[#allocation4]]
        %p184 = scmp.lt.s32.totalorder %s183, 2
        %s185 = scalar_select %p184, %s183, 2
        %s186 = smul.addr %s185, 2
        %s187 = scalar_lea.vmem %s3, %s186
        %s188 = sld [smem:[#allocation4]]
        %s189 = smul.u32 2, %s24
        %p190 = scmp.eq.s32.totalorder %s23, 0
        // Predicated region
        $region33: #{tpu_custom_call.1} parent=31 // pred_check
          %p191 = pneg %p190
        $region34: #{tpu_custom_call.1} parent=31 // pred_check_branch
          %193 = sbr.rel (%p191) target = $region36
        $region35: #{tpu_custom_call.1} parent=31 // pred_region
          %v194 = vld [vmem:[%s1] sm:$0x7]
          %v195 = vlaneseq
          %vm196 = vcmp.ge.s32.totalorder %v195, 0
          %vm197 = vcmp.lt.s32.totalorder %v195, 384
          %vm198 = vmand %vm196, %vm197
          %199 = vst.msk [vmem:[%s182] sm:$0x7] %vm198, %v194
          %200 = vst.msk [vmem:[%s182 + $0x3] sm:$0x7] %vm198, %v194
        $region36: #{tpu_custom_call.1} parent=31 // pred_fallthru
          _
        %p201 = scmp.eq.s32.totalorder %s23, 1
        // Predicated region
        $region37: #{tpu_custom_call.1} parent=31 // pred_check
          %p202 = pneg %p201
        $region38: #{tpu_custom_call.1} parent=31 // pred_check_branch
          %204 = sbr.rel (%p202) target = $region40
        $region39: #{tpu_custom_call.1} parent=31 // pred_region
          %p205 = scmp.eq.s32.totalorder %s24, 0
          // Predicated region
          $region41: #{tpu_custom_call.1} parent=39 // pred_check
            %p206 = pneg %p205
          $region42: #{tpu_custom_call.1} parent=39 // pred_check_branch
            %208 = sbr.rel (%p206) target = $region44
          $region43: #{tpu_custom_call.1} parent=39 // pred_region
            %v209 = vld [vmem:[%s2] sm:$0x1]
            %v210 = vlaneseq
            %vm211 = vcmp.ge.s32.totalorder %v210, 0
            %vm212 = vcmp.lt.s32.totalorder %v210, 128
            %vm213 = vmand %vm211, %vm212
            %214 = vst.msk [vmem:[#allocation2] sm:$0x1] %vm213, %v209
            %v215 = vld [vmem:[%s187] sm:$0x3]
            %vm216 = vcmp.lt.s32.totalorder %v210, 256
            %vm217 = vmand %vm211, %vm216
            %218 = vst.msk [vmem:[#allocation2 + $0x1] sm:$0x3] %vm217, %v215
          $region44: #{tpu_custom_call.1} parent=39 // pred_fallthru
            _
          %v219 = vld [vmem:[#allocation2] sm:$0x7]
          %v220 = vlaneseq
          %vm221 = vcmp.ge.s32.totalorder %v220, 0
          %vm222 = vcmp.lt.s32.totalorder %v220, 384
          %vm223 = vmand %vm221, %vm222
          %224 = vst.msk [vmem:[%s182] sm:$0x7] %vm223, %v219
          %225 = vst.msk [vmem:[%s182 + $0x3] sm:$0x7] %vm223, %v219
        $region40: #{tpu_custom_call.1} parent=31 // pred_fallthru
          _
        %s226 = sand.u32 %s111, 1
        %s227 = scalar_lea.sflag [#allocation6], %s226
        %s228 = sand.u32 %s111, 1
        %s229 = smul.addr %s228, 6
        %s230 = scalar_lea.vmem [#allocation5], %s229
        // Predicated region
        $region45: #{tpu_custom_call.1} parent=31 // pred_check
          %p231 = pneg %p121
        $region46: #{tpu_custom_call.1} parent=31 // pred_check_branch
          %233 = sbr.rel (%p231) target = $region48
        $region47: #{tpu_custom_call.1} parent=31 // pred_region
          %s234 = smul.u32 2, %s24
          %s236 = ssub.s32 96, 96
          %237 = vsyncadd %s227, %s236
          %s238 = smul.addr %s234, 3
          %s239 = smul.addr %s23, 6
          %s240 = sadd.s32 %s238, %s239
          %s241 = smul.addr %s240, 16
          %s242 = scalar_lea.hbm %s4, %s241
          %s243 = sshll.u32 %s230, 4
          %s244 = int_to_ptr.vmem [resolvable:$true] %s243
          %249 = dma.vmem_to_hbm [thread:$0]  %s244, 96, %s242, %s227, 48, 48, 3
        $region48: #{tpu_custom_call.1} parent=31 // pred_fallthru
          _
      $region32: #{tpu_custom_call.1} parent=5 // pred_fallthru
        _
      %p250 = scmp.le.s32.totalorder 2, %s14
      // Predicated region
      $region49: #{tpu_custom_call.1} parent=5 // pred_check
        %p251 = pneg %p250
      $region50: #{tpu_custom_call.1} parent=5 // pred_check_branch
        %253 = sbr.rel (%p251) target = $region52
      $region51: #{tpu_custom_call.1} parent=5 // pred_region
        %s254 = ssub.s32 %s14, 2
        // Predicated region
        $region53: #{tpu_custom_call.1} parent=51 // pred_check
          %p255 = pneg %p127
        $region54: #{tpu_custom_call.1} parent=51 // pred_check_branch
          %257 = sbr.rel (%p255) target = $region56
        $region55: #{tpu_custom_call.1} parent=51 // pred_region
          %s258 = sand.u32 %s112, 1
          %s259 = scalar_lea.sflag [#allocation6], %s258
          %s260 = sand.u32 %s112, 1
          %s261 = smul.addr %s260, 6
          %s262 = scalar_lea.vmem [#allocation5], %s261
          %263 = dma.done %s259, 96
        $region56: #{tpu_custom_call.1} parent=51 // pred_fallthru
          _
      $region52: #{tpu_custom_call.1} parent=5 // pred_fallthru
        _
    $region6: #{tpu_custom_call.1} parent=1 // loop_footer
      %s18 = sadd.s32 1, %s14
    $region7: #{tpu_custom_call.1} parent=1 // loop_footer_branch
      %13 = sbr.rel target = $region3
    $region8: #{tpu_custom_call.1} parent=1 // loop_exit
      _
    %264 = vsyncpa [#allocation6], 1
    %s265 = scalar_lea.sflag [#allocation6], 1
    %266 = vsyncpa %s265, 1

</llo_original>
